<compile_context>
chip_gen: v5e
topology: v5e:2x2
jax: 0.10.0
libtpu: 0.0.40
codegen_flags: <defaults>
</compile_context>

<pallas_src>
import functools
import math
from typing import NamedTuple

import jax
import jax.numpy as jnp
from jax.experimental import pallas as pl
from jax.experimental.pallas import tpu as pltpu

_LANE = 128


def _round_up(x, m):
    return ((x + m - 1) // m) * m


def _vmem_capacity_bytes():
    try:
        return int(pltpu.get_tpu_info().vmem_capacity_bytes)
    except Exception:  # pragma: no cover - conservative fallback if query unavailable
        return 128 * 1024 * 1024


def _gelu(h, approximate):
    if approximate:
        # tanh-approx GELU: the transcendental routes to the EUP slot, freeing the VALU
        # (on v6e/v7x the erf polynomial, not the matmul, saturates the VLIW for small H).
        # ~1e-3 deviation from PyTorch's exact-erf nn.GELU() default.
        return jax.nn.gelu(h, approximate=True)
    return 0.5 * h * (1.0 + jax.lax.erf(h * (1.0 / math.sqrt(2.0))))


# ---------------------------------------------------------------------------
# Kernels
# ---------------------------------------------------------------------------

def _mlp_kernel_resident(x_ref, wfc_ref, bfc_ref, wproj_ref, bproj_ref, o_ref,
                         *, approximate_gelu):
    # x: [TM, Hp] bf16; wfc: [Hp, Fp] bf16; bfc: [1, Fp] f32; wproj: [Fp, Hp] bf16;
    # bproj: [1, Hp] f32.  Weights are VMEM-resident across the token grid.
    x = x_ref[...]
    h = jnp.dot(x, wfc_ref[...], preferred_element_type=jnp.float32) + bfc_ref[...]
    h = _gelu(h, approximate_gelu)
    out = jnp.dot(h.astype(wproj_ref.dtype), wproj_ref[...],
                  preferred_element_type=jnp.float32)
    out = out + bproj_ref[...]
    # Dropout: identity in eval/inference mode.
    o_ref[...] = out.astype(o_ref.dtype)


def _mlp_kernel_ftiled(x_ref, wfc_ref, bfc_ref, wproj_ref, bproj_ref, o_ref, acc_ref,
                       *, approximate_gelu):
    # Grid = (token tiles, F tiles).  F is the reduction axis (last, "arbitrary").
    # x: [TM, Hp]; wfc: [Hp, TF]; bfc: [1, TF]; wproj: [TF, Hp]; bproj: [1, Hp];
    # acc: [TM, Hp] f32 scratch accumulator.
    k = pl.program_id(1)

    @pl.when(k == 0)
    def _():
        acc_ref[...] = jnp.zeros_like(acc_ref)

    h = jnp.dot(x_ref[...], wfc_ref[...], preferred_element_type=jnp.float32) + bfc_ref[...]
    h = _gelu(h, approximate_gelu)  # elementwise over F, so per-F-tile is exact
    acc_ref[...] += jnp.dot(h.astype(wproj_ref.dtype), wproj_ref[...],
                            preferred_element_type=jnp.float32)

    @pl.when(k == pl.num_programs(1) - 1)
    def _():
        # Dropout: identity in eval/inference mode.
        o_ref[...] = (acc_ref[...] + bproj_ref[...]).astype(o_ref.dtype)


# ---------------------------------------------------------------------------
# Parameter preparation (pad + cast once, outside the per-call path)
# ---------------------------------------------------------------------------

def _pad2d(a, rows, cols, dtype):
    a = a.astype(dtype)
    r, c = a.shape
    if r == rows and c == cols:
        return a
    return jnp.pad(a, ((0, rows - r), (0, cols - c)))


class MLPParams(NamedTuple):
    w_fc: jax.Array    # [Hp, Fp] compute_dtype
    b_fc: jax.Array    # [1, Fp]  f32
    w_proj: jax.Array  # [Fp, Hp] compute_dtype
    b_proj: jax.Array  # [1, Hp]  f32
    hidden: int
    fc: int


def prepare_mlp_params(w_fc, b_fc, w_proj, b_proj, compute_dtype=jnp.bfloat16):
    """Pad feature dims to multiples of 128 lanes and cast matmul operands to
    compute_dtype ONCE (zero padding keeps the math exact).  Cache the result and
    reuse it across forward calls."""
    H, F = w_fc.shape
    assert w_proj.shape == (F, H)
    Hp = _round_up(H, _LANE)
    Fp = _round_up(F, _LANE)
    return MLPParams(
        _pad2d(w_fc, Hp, Fp, compute_dtype),
        _pad2d(jnp.reshape(b_fc, (1, F)), 1, Fp, jnp.float32),
        _pad2d(w_proj, Fp, Hp, compute_dtype),
        _pad2d(jnp.reshape(b_proj, (1, H)), 1, Hp, jnp.float32),
        H, F)


# ---------------------------------------------------------------------------
# Forward
# ---------------------------------------------------------------------------

def _choose_tm(T, bytes_fn, budget):
    """Largest token tile that fits `budget`, biased to multiples of 256 (MXU M-fill on
    v6e/v7x), multiple of 16 (bf16 sublane packing), and clamped so large T gives the
    v7x megacore >= 2 tiles to shard."""
    tm = 16
    for cand in (2048, 1024, 768, 512, 256, 128, 64, 32, 16):
        if bytes_fn(cand) <= budget:
            tm = cand
            break
    if T > 256:  # keep >= 2 grid tiles so both v7x TensorCores get work
        tm = min(tm, _round_up(pl.cdiv(T, 2), 256))
    return max(16, min(tm, _round_up(T, 16)))


def _run_with_buffered_fallback(build_call, args):
    """Run the pallas_call; if pl.Buffered(1) (single-buffered resident weights) is
    rejected by this JAX build, retry with default buffering."""
    last_err = None
    for use_buffered in (True, False):
        try:
            out = build_call(use_buffered)(*args)
            return jax.block_until_ready(out)
        except Exception as e:  # pragma: no cover - fallback path
            last_err = e
    raise last_err


def mlp_forward(x, params: MLPParams, *, out_dtype=None, approximate_gelu=True,
                force_f_tiling=False, tf=None):
    """x: [B, S, H].  params: prepare_mlp_params(...) output (weights in [in, out]
    layout, i.e. transposed from nn.Linear).  Returns [B, S, H] in out_dtype
    (default: x.dtype; pass jnp.bfloat16 to halve output DMA if acceptable)."""
    B, S, H = x.shape
    assert H == params.hidden
    T = B * S
    Hp, Fp = params.w_fc.shape
    compute_dtype = params.w_fc.dtype
    cd_bytes = jnp.dtype(compute_dtype).itemsize
    out_dtype = x.dtype if out_dtype is None else out_dtype
    out_bytes = jnp.dtype(out_dtype).itemsize

    # Generation-aware VMEM budget (128 MiB on v5e/v6e, 64 MiB on v7x).
    vmem_cap = _vmem_capacity_bytes()
    vmem_limit = int(min(vmem_cap // 2, 64 * 1024 * 1024))
    budget = (vmem_limit * 3) // 4

    # Resident-weights working set (weights single-buffered via Buffered(1); inputs and
    # outputs double-buffered; counts the f32 h AND its bf16 cast).
    def resident_bytes(tm):
        weights = (Hp * Fp + Fp * Hp) * cd_bytes
        biases = (Fp + Hp) * 4
        x_tiles = 2 * tm * Hp * cd_bytes
        o_tiles = 2 * tm * Hp * out_bytes
        interm = tm * Fp * (4 + cd_bytes)
        return weights + biases + x_tiles + o_tiles + interm

    use_ftiled = force_f_tiling or resident_bytes(256) > budget
    kernel_kw = dict(approximate_gelu=approximate_gelu)

    if not use_ftiled:
        # ---------------- Path A: VMEM-resident weights, token-tiled grid ----------
        TM = _choose_tm(T, resident_bytes, budget)
        Tp = _round_up(T, TM)
        x_p = _pad2d(x.reshape(T, H), Tp, Hp, compute_dtype)
        kernel = functools.partial(_mlp_kernel_resident, **kernel_kw)

        def build_call(use_buffered):
            def const(shape):
                if use_buffered:
                    return pl.BlockSpec(shape, lambda i: (0, 0),
                                        pipeline_mode=pl.Buffered(1))
                return pl.BlockSpec(shape, lambda i: (0, 0))

            in_specs = [
                pl.BlockSpec((TM, Hp), lambda i: (i, 0)),   # x: tiled over tokens
                const((Hp, Fp)),                            # W_fc: resident
                const((1, Fp)),                             # b_fc
                const((Fp, Hp)),                            # W_proj
                const((1, Hp)),                             # b_proj
            ]
            return pl.pallas_call(
                kernel,
                out_shape=jax.ShapeDtypeStruct((Tp, Hp), out_dtype),
                grid=(Tp // TM,),
                in_specs=in_specs,
                out_specs=pl.BlockSpec((TM, Hp), lambda i: (i, 0)),
                compiler_params=pltpu.CompilerParams(
                    dimension_semantics=("parallel",),
                    vmem_limit_bytes=vmem_limit),
            )

        out2d = _run_with_buffered_fallback(
            build_call, (x_p, params.w_fc, params.b_fc, params.w_proj, params.b_proj))

    else:
        # ---------------- Path B: F (reduction) axis, weight tiles pipelined -------
        def ftiled_bytes(tm, tf_):
            w_tiles = 2 * (Hp * tf_ + tf_ * Hp) * cd_bytes   # double-buffered weight tiles
            b_tiles = 2 * tf_ * 4 + Hp * 4
            x_tiles = 2 * tm * Hp * cd_bytes
            o_tiles = 2 * tm * Hp * out_bytes
            acc = tm * Hp * 4
            interm = tm * tf_ * (4 + cd_bytes)
            return w_tiles + b_tiles + x_tiles + o_tiles + acc + interm

        if tf is None:
            TF = 128
            for cand in (2048, 1024, 512, 256, 128):
                if cand <= Fp and Fp % cand == 0 and ftiled_bytes(256, cand) <= budget:
                    TF = cand
                    break
        else:
            TF = tf
            assert Fp % TF == 0, "tf must divide the lane-padded F"

        TM = _choose_tm(T, lambda tm: ftiled_bytes(tm, TF), budget)
        Tp = _round_up(T, TM)
        x_p = _pad2d(x.reshape(T, H), Tp, Hp, compute_dtype)
        kernel = functools.partial(_mlp_kernel_ftiled, **kernel_kw)

        def build_call(use_buffered):
            if use_buffered:
                bproj_spec = pl.BlockSpec((1, Hp), lambda i, k: (0, 0),
                                          pipeline_mode=pl.Buffered(1))
            else:
                bproj_spec = pl.BlockSpec((1, Hp), lambda i, k: (0, 0))
            in_specs = [
                pl.BlockSpec((TM, Hp), lambda i, k: (i, 0)),  # x: tiled over tokens
                pl.BlockSpec((Hp, TF), lambda i, k: (0, k)),  # W_fc: tiled over F cols
                pl.BlockSpec((1, TF), lambda i, k: (0, k)),   # b_fc
                pl.BlockSpec((TF, Hp), lambda i, k: (k, 0)),  # W_proj: tiled over F rows
                bproj_spec,                                   # b_proj: constant
            ]
            return pl.pallas_call(
                kernel,
                out_shape=jax.ShapeDtypeStruct((Tp, Hp), out_dtype),
                grid=(Tp // TM, Fp // TF),
                in_specs=in_specs,
                out_specs=pl.BlockSpec((TM, Hp), lambda i, k: (i, 0)),
                scratch_shapes=[pltpu.VMEM((TM, Hp), jnp.float32)],
                compiler_params=pltpu.CompilerParams(
                    dimension_semantics=("parallel", "arbitrary"),
                    vmem_limit_bytes=vmem_limit),
            )

        out2d = _run_with_buffered_fallback(
            build_call, (x_p, params.w_fc, params.b_fc, params.w_proj, params.b_proj))

    return out2d[:T, :H].reshape(B, S, H)


# ---------------------------------------------------------------------------
# Pure-JAX reference (same bf16-matmul / f32-accumulate / GELU path)
# ---------------------------------------------------------------------------

def _reference_mlp(x2d, w_fc, b_fc, w_proj, b_proj, *, approximate_gelu=True,
                   compute_dtype=jnp.bfloat16):
    h = jnp.dot(x2d.astype(compute_dtype), w_fc.astype(compute_dtype),
                preferred_element_type=jnp.float32) + b_fc
    h = _gelu(h, approximate_gelu)
    out = jnp.dot(h.astype(compute_dtype), w_proj.astype(compute_dtype),
                  preferred_element_type=jnp.float32) + b_proj
    return out


if __name__ == "__main__":
    # args.hidden_size=32, args.fc_size=128, args.bias=True, args.dropout=0.1 (eval -> identity)
    B, S, H, F = 2, 8, 32, 128

    key = jax.random.PRNGKey(0)
    k_x, k_wfc, k_bfc, k_wproj, k_bproj = jax.random.split(key, 5)

    x = jax.random.normal(k_x, (B, S, H), dtype=jnp.float32)
    # Deterministic "Kaiming-ish" init; stored as [in, out] (transposed nn.Linear weight).
    w_fc = jax.random.normal(k_wfc, (H, F), dtype=jnp.float32) * (1.0 / math.sqrt(H))
    b_fc = jax.random.normal(k_bfc, (1, F), dtype=jnp.float32) * 0.01
    w_proj = jax.random.normal(k_wproj, (F, H), dtype=jnp.float32) * (1.0 / math.sqrt(F))
    b_proj = jax.random.normal(k_bproj, (1, H), dtype=jnp.float32) * 0.01

    params = prepare_mlp_params(w_fc, b_fc, w_proj, b_proj)

    # Path A: resident weights (default for this shape).
    out = mlp_forward(x, params)
    out = jax.block_until_ready(out)
    ref = _reference_mlp(x.reshape(B * S, H), w_fc, b_fc, w_proj, b_proj).reshape(B, S, H)
    assert out.shape == (B, S, H)
    assert jnp.allclose(out, ref, atol=2e-2, rtol=2e-2), "mismatch vs reference (resident path)"

    # Path B: exercise the F-reduction (weight-tiled) path with multiple k-steps.
    F2 = 512
    k_wfc2, k_wproj2 = jax.random.split(jax.random.PRNGKey(1), 2)
    w_fc2 = jax.random.normal(k_wfc2, (H, F2), dtype=jnp.float32) * (1.0 / math.sqrt(H))
    b_fc2 = jnp.zeros((1, F2), jnp.float32)
    w_proj2 = jax.random.normal(k_wproj2, (F2, H), dtype=jnp.float32) * (1.0 / math.sqrt(F2))
    b_proj2 = jnp.zeros((1, H), jnp.float32)
    params2 = prepare_mlp_params(w_fc2, b_fc2, w_proj2, b_proj2)

    out2 = mlp_forward(x, params2, force_f_tiling=True, tf=128)
    out2 = jax.block_until_ready(out2)
    ref2 = _reference_mlp(x.reshape(B * S, H), w_fc2, b_fc2, w_proj2, b_proj2).reshape(B, S, H)
    assert jnp.allclose(out2, ref2, atol=2e-2, rtol=2e-2), "mismatch vs reference (F-tiled path)"

    print("KERNEL_OK")
</pallas_src>

<mosaic_0001>
module attributes {stable_mosaic.version = 11 : i64} {
  func.func @_mlp_kernel_resident(%arg0: i32, %arg1: memref<16x128xbf16, #tpu.memory_space<vmem>>, %arg2: memref<128x128xbf16, #tpu.memory_space<vmem>>, %arg3: memref<1x128xf32, #tpu.memory_space<vmem>>, %arg4: memref<128x128xbf16, #tpu.memory_space<vmem>>, %arg5: memref<1x128xf32, #tpu.memory_space<vmem>>, %arg6: memref<16x128xf32, #tpu.memory_space<vmem>>) attributes {dimension_semantics = [#tpu.dimension_semantics<parallel>], iteration_bounds = array<i64: 1>, scalar_prefetch = 0 : i64, scratch_operands = 0 : i64, tpu.core_type = #tpu.core_type<tc>, window_params = [{transform_indices = @transform_0, window_bounds = array<i64: 16, 128>}, {pipeline_mode = #tpu.pipeline_mode<synchronous>, transform_indices = @transform_1, window_bounds = array<i64: 128, 128>}, {pipeline_mode = #tpu.pipeline_mode<synchronous>, transform_indices = @transform_2, window_bounds = array<i64: 1, 128>}, {pipeline_mode = #tpu.pipeline_mode<synchronous>, transform_indices = @transform_3, window_bounds = array<i64: 128, 128>}, {pipeline_mode = #tpu.pipeline_mode<synchronous>, transform_indices = @transform_4, window_bounds = array<i64: 1, 128>}, {transform_indices = @transform_5, window_bounds = array<i64: 16, 128>}]} {
    %c0 = arith.constant 0 : index
    %c0_0 = arith.constant 0 : index
    %0 = vector.load %arg1[%c0, %c0_0] : memref<16x128xbf16, #tpu.memory_space<vmem>>, vector<16x128xbf16>
    %c0_1 = arith.constant 0 : index
    %c0_2 = arith.constant 0 : index
    %1 = vector.load %arg2[%c0_1, %c0_2] : memref<128x128xbf16, #tpu.memory_space<vmem>>, vector<128x128xbf16>
    %cst = arith.constant dense<0.000000e+00> : vector<16x128xf32>
    %2 = tpu.matmul %0, %1, %cst {dimension_numbers = #tpu.dot_dimension_numbers<[1], [0], [0], [1], [0, 0, 1, 1], [], []>} : vector<16x128xbf16>, vector<128x128xbf16>, vector<16x128xf32> -> vector<16x128xf32>
    %c0_3 = arith.constant 0 : index
    %c0_4 = arith.constant 0 : index
    %3 = vector.load %arg3[%c0_3, %c0_4] : memref<1x128xf32, #tpu.memory_space<vmem>>, vector<1x128xf32>
    %4 = vector.broadcast %3 : vector<1x128xf32> to vector<16x128xf32>
    %5 = arith.addf %2, %4 : vector<16x128xf32>
    %6 = arith.mulf %5, %5 : vector<16x128xf32>
    %7 = arith.mulf %5, %6 : vector<16x128xf32>
    %cst_5 = arith.constant 4.471500e-02 : f32
    %8 = vector.broadcast %cst_5 : f32 to vector<16x128xf32>
    %9 = arith.mulf %8, %7 : vector<16x128xf32>
    %10 = arith.addf %5, %9 : vector<16x128xf32>
    %cst_6 = arith.constant 0.797884583 : f32
    %11 = vector.broadcast %cst_6 : f32 to vector<16x128xf32>
    %12 = arith.mulf %11, %10 : vector<16x128xf32>
    %13 = math.tanh %12 : vector<16x128xf32>
    %cst_7 = arith.constant 1.000000e+00 : f32
    %14 = vector.broadcast %cst_7 : f32 to vector<16x128xf32>
    %15 = arith.addf %14, %13 : vector<16x128xf32>
    %cst_8 = arith.constant 5.000000e-01 : f32
    %16 = vector.broadcast %cst_8 : f32 to vector<16x128xf32>
    %17 = arith.mulf %16, %15 : vector<16x128xf32>
    %18 = arith.mulf %5, %17 : vector<16x128xf32>
    %19 = arith.truncf %18 : vector<16x128xf32> to vector<16x128xbf16>
    %c0_9 = arith.constant 0 : index
    %c0_10 = arith.constant 0 : index
    %20 = vector.load %arg4[%c0_9, %c0_10] : memref<128x128xbf16, #tpu.memory_space<vmem>>, vector<128x128xbf16>
    %cst_11 = arith.constant dense<0.000000e+00> : vector<16x128xf32>
    %21 = tpu.matmul %19, %20, %cst_11 {dimension_numbers = #tpu.dot_dimension_numbers<[1], [0], [0], [1], [0, 0, 1, 1], [], []>} : vector<16x128xbf16>, vector<128x128xbf16>, vector<16x128xf32> -> vector<16x128xf32>
    %c0_12 = arith.constant 0 : index
    %c0_13 = arith.constant 0 : index
    %22 = vector.load %arg5[%c0_12, %c0_13] : memref<1x128xf32, #tpu.memory_space<vmem>>, vector<1x128xf32>
    %23 = vector.broadcast %22 : vector<1x128xf32> to vector<16x128xf32>
    %24 = arith.addf %21, %23 : vector<16x128xf32>
    %c0_14 = arith.constant 0 : index
    %c0_15 = arith.constant 0 : index
    %25 = vector.load %arg6[%c0_14, %c0_15] : memref<16x128xf32, #tpu.memory_space<vmem>>, vector<16x128xf32>
    tpu.vector_store %arg6[%c0_14, %c0_15], %24 {strides = array<i32>} : memref<16x128xf32, #tpu.memory_space<vmem>>, vector<16x128xf32>,
    return
  }
  func.func @transform_0(%arg0: i32) -> (i32, i32) {
    %c0_i32 = arith.constant 0 : i32
    %c0_i32_0 = arith.constant 0 : i32
    return %arg0, %c0_i32 : i32, i32
  }
  func.func @transform_1(%arg0: i32) -> (i32, i32) {
    %c0_i32 = arith.constant 0 : i32
    %c0_i32_0 = arith.constant 0 : i32
    %c0_i32_1 = arith.constant 0 : i32
    return %c0_i32, %c0_i32_0 : i32, i32
  }
  func.func @transform_2(%arg0: i32) -> (i32, i32) {
    %c0_i32 = arith.constant 0 : i32
    %c0_i32_0 = arith.constant 0 : i32
    %c0_i32_1 = arith.constant 0 : i32
    return %c0_i32, %c0_i32_0 : i32, i32
  }
  func.func @transform_3(%arg0: i32) -> (i32, i32) {
    %c0_i32 = arith.constant 0 : i32
    %c0_i32_0 = arith.constant 0 : i32
    %c0_i32_1 = arith.constant 0 : i32
    return %c0_i32, %c0_i32_0 : i32, i32
  }
  func.func @transform_4(%arg0: i32) -> (i32, i32) {
    %c0_i32 = arith.constant 0 : i32
    %c0_i32_0 = arith.constant 0 : i32
    %c0_i32_1 = arith.constant 0 : i32
    return %c0_i32, %c0_i32_0 : i32, i32
  }
  func.func @transform_5(%arg0: i32) -> (i32, i32) {
    %c0_i32 = arith.constant 0 : i32
    %c0_i32_0 = arith.constant 0 : i32
    return %arg0, %c0_i32 : i32, i32
  }
}

module attributes {stable_mosaic.version = 11 : i64} {
  func.func @_mlp_kernel_resident(%arg0: i32, %arg1: memref<16x128xbf16, #tpu.memory_space<vmem>>, %arg2: memref<128x128xbf16, #tpu.memory_space<vmem>>, %arg3: memref<1x128xf32, #tpu.memory_space<vmem>>, %arg4: memref<128x128xbf16, #tpu.memory_space<vmem>>, %arg5: memref<1x128xf32, #tpu.memory_space<vmem>>, %arg6: memref<16x128xf32, #tpu.memory_space<vmem>>) attributes {dimension_semantics = [#tpu.dimension_semantics<parallel>], iteration_bounds = array<i64: 1>, scalar_prefetch = 0 : i64, scratch_operands = 0 : i64, tpu.core_type = #tpu.core_type<tc>, window_params = [{transform_indices = @transform_0, window_bounds = array<i64: 16, 128>}, {pipeline_mode = #tpu.pipeline_mode<synchronous>, transform_indices = @transform_1, window_bounds = array<i64: 128, 128>}, {pipeline_mode = #tpu.pipeline_mode<synchronous>, transform_indices = @transform_2, window_bounds = array<i64: 1, 128>}, {pipeline_mode = #tpu.pipeline_mode<synchronous>, transform_indices = @transform_3, window_bounds = array<i64: 128, 128>}, {pipeline_mode = #tpu.pipeline_mode<synchronous>, transform_indices = @transform_4, window_bounds = array<i64: 1, 128>}, {transform_indices = @transform_5, window_bounds = array<i64: 16, 128>}]} {
    %c0 = arith.constant 0 : index
    %c0_0 = arith.constant 0 : index
    %0 = vector.load %arg1[%c0, %c0_0] : memref<16x128xbf16, #tpu.memory_space<vmem>>, vector<16x128xbf16>
    %c0_1 = arith.constant 0 : index
    %c0_2 = arith.constant 0 : index
    %1 = vector.load %arg2[%c0_1, %c0_2] : memref<128x128xbf16, #tpu.memory_space<vmem>>, vector<128x128xbf16>
    %cst = arith.constant dense<0.000000e+00> : vector<16x128xf32>
    %2 = tpu.matmul %0, %1, %cst {dimension_numbers = #tpu.dot_dimension_numbers<[1], [0], [0], [1], [0, 0, 1, 1], [], []>} : vector<16x128xbf16>, vector<128x128xbf16>, vector<16x128xf32> -> vector<16x128xf32>
    %c0_3 = arith.constant 0 : index
    %c0_4 = arith.constant 0 : index
    %3 = vector.load %arg3[%c0_3, %c0_4] : memref<1x128xf32, #tpu.memory_space<vmem>>, vector<1x128xf32>
    %4 = vector.broadcast %3 : vector<1x128xf32> to vector<16x128xf32>
    %5 = arith.addf %2, %4 : vector<16x128xf32>
    %6 = arith.mulf %5, %5 : vector<16x128xf32>
    %7 = arith.mulf %5, %6 : vector<16x128xf32>
    %cst_5 = arith.constant 4.471500e-02 : f32
    %8 = vector.broadcast %cst_5 : f32 to vector<16x128xf32>
    %9 = arith.mulf %8, %7 : vector<16x128xf32>
    %10 = arith.addf %5, %9 : vector<16x128xf32>
    %cst_6 = arith.constant 0.797884583 : f32
    %11 = vector.broadcast %cst_6 : f32 to vector<16x128xf32>
    %12 = arith.mulf %11, %10 : vector<16x128xf32>
    %13 = math.tanh %12 : vector<16x128xf32>
    %cst_7 = arith.constant 1.000000e+00 : f32
    %14 = vector.broadcast %cst_7 : f32 to vector<16x128xf32>
    %15 = arith.addf %14, %13 : vector<16x128xf32>
    %cst_8 = arith.constant 5.000000e-01 : f32
    %16 = vector.broadcast %cst_8 : f32 to vector<16x128xf32>
    %17 = arith.mulf %16, %15 : vector<16x128xf32>
    %18 = arith.mulf %5, %17 : vector<16x128xf32>
    %19 = arith.truncf %18 : vector<16x128xf32> to vector<16x128xbf16>
    %c0_9 = arith.constant 0 : index
    %c0_10 = arith.constant 0 : index
    %20 = vector.load %arg4[%c0_9, %c0_10] : memref<128x128xbf16, #tpu.memory_space<vmem>>, vector<128x128xbf16>
    %cst_11 = arith.constant dense<0.000000e+00> : vector<16x128xf32>
    %21 = tpu.matmul %19, %20, %cst_11 {dimension_numbers = #tpu.dot_dimension_numbers<[1], [0], [0], [1], [0, 0, 1, 1], [], []>} : vector<16x128xbf16>, vector<128x128xbf16>, vector<16x128xf32> -> vector<16x128xf32>
    %c0_12 = arith.constant 0 : index
    %c0_13 = arith.constant 0 : index
    %22 = vector.load %arg5[%c0_12, %c0_13] : memref<1x128xf32, #tpu.memory_space<vmem>>, vector<1x128xf32>
    %23 = vector.broadcast %22 : vector<1x128xf32> to vector<16x128xf32>
    %24 = arith.addf %21, %23 : vector<16x128xf32>
    %c0_14 = arith.constant 0 : index
    %c0_15 = arith.constant 0 : index
    %25 = vector.load %arg6[%c0_14, %c0_15] : memref<16x128xf32, #tpu.memory_space<vmem>>, vector<16x128xf32>
    tpu.vector_store %arg6[%c0_14, %c0_15], %24 {strides = array<i32>} : memref<16x128xf32, #tpu.memory_space<vmem>>, vector<16x128xf32>,
    return
  }
  func.func @transform_0(%arg0: i32) -> (i32, i32) {
    %c0_i32 = arith.constant 0 : i32
    %c0_i32_0 = arith.constant 0 : i32
    return %arg0, %c0_i32 : i32, i32
  }
  func.func @transform_1(%arg0: i32) -> (i32, i32) {
    %c0_i32 = arith.constant 0 : i32
    %c0_i32_0 = arith.constant 0 : i32
    %c0_i32_1 = arith.constant 0 : i32
    return %c0_i32, %c0_i32_0 : i32, i32
  }
  func.func @transform_2(%arg0: i32) -> (i32, i32) {
    %c0_i32 = arith.constant 0 : i32
    %c0_i32_0 = arith.constant 0 : i32
    %c0_i32_1 = arith.constant 0 : i32
    return %c0_i32, %c0_i32_0 : i32, i32
  }
  func.func @transform_3(%arg0: i32) -> (i32, i32) {
    %c0_i32 = arith.constant 0 : i32
    %c0_i32_0 = arith.constant 0 : i32
    %c0_i32_1 = arith.constant 0 : i32
    return %c0_i32, %c0_i32_0 : i32, i32
  }
  func.func @transform_4(%arg0: i32) -> (i32, i32) {
    %c0_i32 = arith.constant 0 : i32
    %c0_i32_0 = arith.constant 0 : i32
    %c0_i32_1 = arith.constant 0 : i32
    return %c0_i32, %c0_i32_0 : i32, i32
  }
  func.func @transform_5(%arg0: i32) -> (i32, i32) {
    %c0_i32 = arith.constant 0 : i32
    %c0_i32_0 = arith.constant 0 : i32
    return %arg0, %c0_i32 : i32, i32
  }
}

</mosaic_0001>

<llo_original>
// kernel: tpu_custom_call.1
$region0: #{tpu_custom_call.1}
  #allocation0 [shape = 'u32[]', space=smem, size = 0x4, offset = 0x4, fixed_abs, tag = 'smem constant byte address 0x4 - core index']
  #allocation1 [shape = 'u32[72,128]{1,0:T(1,128)}', space=vmem, size = 0x9000, scoped, tag = 'internal scratch']
  %s0 = inlined_call_operand.hbm [shape: bf16[16,128], index: 0, kind: input, shape index: {}]
  %s1 = inlined_call_operand.hbm [shape: bf16[128,128], index: 1, kind: input, shape index: {}]
  %s2 = inlined_call_operand.vmem [shape: f32[1,128], index: 2, kind: input, shape index: {}]
  %s3 = inlined_call_operand.hbm [shape: bf16[128,128], index: 3, kind: input, shape index: {}]
  %s4 = inlined_call_operand.vmem [shape: f32[1,128], index: 4, kind: input, shape index: {}]
  %s5 = inlined_call_operand.hbm [shape: f32[16,128], index: 5, kind: output, shape index: {}]
  %s6 = sld [smem:[#allocation0]]
  $region42: #{tpu_custom_call.1} parent=0
    _
  %s8 = ssub.s32 1, %s6
  %s9 = scalar_select 0, %s8, %s6
  $region1: #{tpu_custom_call.1} parent=0
    #allocation2 [shape = 'u8[4096]{0}', space=vmem, size = 0x1000, scoped, tag = 'input window, operand 0, single buffered']
    #allocation3 [shape = 's32[1]{0}', space=sflag, size = 0x4, scoped, tag = 'scoped memory for tpu_custom_call.1']
    #allocation4 [shape = 's32[1]{0}', space=sflag, size = 0x4, scoped, tag = 'scoped memory for tpu_custom_call.1']
    #allocation5 [shape = 'u8[32768]{0}', space=vmem, size = 0x8000, scoped, tag = 'input window, operand 1, single buffered']
    #allocation6 [shape = 's32[1]{0}', space=sflag, size = 0x4, scoped, tag = 'scoped memory for tpu_custom_call.1']
    #allocation7 [shape = 'u8[32768]{0}', space=vmem, size = 0x8000, scoped, tag = 'input window, operand 3, single buffered']
    #allocation8 [shape = 'u8[8192]{0}', space=vmem, size = 0x2000, scoped, tag = 'output window, operand 0, single buffered']
    %10 = vsyncpa [#allocation3], 0
    %11 = vsyncpa [#allocation6], 0
    %12 = vsyncpa [#allocation4], 0
    // Predicated region
    $region2: #{tpu_custom_call.1} parent=1 // pred_check
      _
    $region3: #{tpu_custom_call.1} parent=1 // pred_check_branch
      %14 = sbr.rel (0) target = $region5
    $region4: #{tpu_custom_call.1} parent=1 // pred_region
      %16 = vsyncadd [#allocation3], 0
      %s17 = sshll.u32 %s0, 4
      %s18 = int_to_ptr.hbm [resolvable:$true] %s17
      %s19 = sshll.u32 [#allocation2], 4
      %s20 = int_to_ptr.vmem [resolvable:$true] %s19
      %25 = dma.hbm_to_vmem [thread:$0]  %s18, 128, %s20, [#allocation3], 64, 64, 4
    $region5: #{tpu_custom_call.1} parent=1 // pred_fallthru
      _
    // Predicated region
    $region6: #{tpu_custom_call.1} parent=1 // pred_check
      _
    $region7: #{tpu_custom_call.1} parent=1 // pred_check_branch
      %27 = sbr.rel (0) target = $region9
    $region8: #{tpu_custom_call.1} parent=1 // pred_region
      %29 = vsyncadd [#allocation6], 0
      %s30 = sshll.u32 %s1, 4
      %s31 = int_to_ptr.hbm [resolvable:$true] %s30
      %s32 = sshll.u32 [#allocation5], 4
      %s33 = int_to_ptr.vmem [resolvable:$true] %s32
      %38 = dma.hbm_to_vmem [thread:$0]  %s31, 1024, %s33, [#allocation6], 64, 64, 4
    $region9: #{tpu_custom_call.1} parent=1 // pred_fallthru
      _
    // Predicated region
    $region10: #{tpu_custom_call.1} parent=1 // pred_check
      _
    $region11: #{tpu_custom_call.1} parent=1 // pred_check_branch
      %40 = sbr.rel (0) target = $region13
    $region12: #{tpu_custom_call.1} parent=1 // pred_region
      _
    $region13: #{tpu_custom_call.1} parent=1 // pred_fallthru
      _
    // Predicated region
    $region14: #{tpu_custom_call.1} parent=1 // pred_check
      _
    $region15: #{tpu_custom_call.1} parent=1 // pred_check_branch
      %42 = sbr.rel (0) target = $region17
    $region16: #{tpu_custom_call.1} parent=1 // pred_region
      %44 = vsyncadd [#allocation6], 0
      %s45 = sshll.u32 %s3, 4
      %s46 = int_to_ptr.hbm [resolvable:$true] %s45
      %s47 = sshll.u32 [#allocation7], 4
      %s48 = int_to_ptr.vmem [resolvable:$true] %s47
      %53 = dma.hbm_to_vmem [thread:$0]  %s46, 1024, %s48, [#allocation6], 64, 64, 4
    $region17: #{tpu_custom_call.1} parent=1 // pred_fallthru
      _
    // Predicated region
    $region18: #{tpu_custom_call.1} parent=1 // pred_check
      _
    $region19: #{tpu_custom_call.1} parent=1 // pred_check_branch
      %55 = sbr.rel (0) target = $region21
    $region20: #{tpu_custom_call.1} parent=1 // pred_region
      _
    $region21: #{tpu_custom_call.1} parent=1 // pred_fallthru
      _
    // Predicated region
    $region22: #{tpu_custom_call.1} parent=1 // pred_check
      _
    $region23: #{tpu_custom_call.1} parent=1 // pred_check_branch
      %57 = sbr.rel (0) target = $region25
    $region24: #{tpu_custom_call.1} parent=1 // pred_region
      %59 = dma.done [#allocation3], 128
    $region25: #{tpu_custom_call.1} parent=1 // pred_fallthru
      _
    // Predicated region
    $region26: #{tpu_custom_call.1} parent=1 // pred_check
      _
    $region27: #{tpu_custom_call.1} parent=1 // pred_check_branch
      %61 = sbr.rel (0) target = $region29
    $region28: #{tpu_custom_call.1} parent=1 // pred_region
      %63 = dma.done [#allocation6], 1024
    $region29: #{tpu_custom_call.1} parent=1 // pred_fallthru
      _
    // Predicated region
    $region30: #{tpu_custom_call.1} parent=1 // pred_check
      _
    $region31: #{tpu_custom_call.1} parent=1 // pred_check_branch
      %65 = sbr.rel (0) target = $region33
    $region32: #{tpu_custom_call.1} parent=1 // pred_region
      %67 = dma.done [#allocation6], 1024
    $region33: #{tpu_custom_call.1} parent=1 // pred_fallthru
      _
    %v68 = vld [vmem:[#allocation2] sm:$0xf]
    %v69 = vld [vmem:[#allocation2 + $0x4] sm:$0xf]
    %v70 = vld [vmem:[#allocation5] sm:$0xf]
    %v71 = vld [vmem:[#allocation5 + $0x4] sm:$0xf]
    %v72 = vld [vmem:[#allocation5 + $0x8] sm:$0xf]
    %v73 = vld [vmem:[#allocation5 + $0xc] sm:$0xf]
    %v74 = vld [vmem:[#allocation5 + $0x10] sm:$0xf]
    %v75 = vld [vmem:[#allocation5 + $0x14] sm:$0xf]
    %v76 = vld [vmem:[#allocation5 + $0x18] sm:$0xf]
    %v77 = vld [vmem:[#allocation5 + $0x1c] sm:$0xf]
    %v78 = vld [vmem:[#allocation5 + $0x20] sm:$0xf]
    %v79 = vld [vmem:[#allocation5 + $0x24] sm:$0xf]
    %v80 = vld [vmem:[#allocation5 + $0x28] sm:$0xf]
    %v81 = vld [vmem:[#allocation5 + $0x2c] sm:$0xf]
    %v82 = vld [vmem:[#allocation5 + $0x30] sm:$0xf]
    %v83 = vld [vmem:[#allocation5 + $0x34] sm:$0xf]
    %v84 = vld [vmem:[#allocation5 + $0x38] sm:$0xf]
    %v85 = vld [vmem:[#allocation5 + $0x3c] sm:$0xf]
    %v86 = vld [vmem:[%s2] sm:$0x1]
    %v88 = vperm.slane %v86, 0
    %v92 = vunpack.c.l.b16 %v68
    %v93 = vunpack.c.l.b16 %v69
    %v94 = vpack.c.b16 %v93, %v92
    %v112 = vunpack.c.l.b16 %v70
    %v113 = vunpack.c.l.b16 %v71
    %v114 = vunpack.c.l.b16 %v72
    %v115 = vunpack.c.l.b16 %v73
    %v116 = vunpack.c.l.b16 %v74
    %v117 = vunpack.c.l.b16 %v75
    %v118 = vunpack.c.l.b16 %v76
    %v119 = vunpack.c.l.b16 %v77
    %v120 = vunpack.c.l.b16 %v78
    %v121 = vunpack.c.l.b16 %v79
    %v122 = vunpack.c.l.b16 %v80
    %v123 = vunpack.c.l.b16 %v81
    %v124 = vunpack.c.l.b16 %v82
    %v125 = vunpack.c.l.b16 %v83
    %v126 = vunpack.c.l.b16 %v84
    %v127 = vunpack.c.l.b16 %v85
    %v128 = vpack.c.b16 %v113, %v112
    %v129 = vpack.c.b16 %v115, %v114
    %v130 = vpack.c.b16 %v117, %v116
    %v131 = vpack.c.b16 %v119, %v118
    %v132 = vpack.c.b16 %v121, %v120
    %v133 = vpack.c.b16 %v123, %v122
    %v134 = vpack.c.b16 %v125, %v124
    %v135 = vpack.c.b16 %v127, %v126
    %144 = vmatpush.bf16.msra.mxu0 %v135
    %145 = vmatpush.bf16.msra.mxu0 %v134
    %146 = vmatpush.bf16.msra.mxu0 %v133
    %147 = vmatpush.bf16.msra.mxu0 %v132
    %148 = vmatpush.bf16.msra.mxu0 %v131
    %149 = vmatpush.bf16.msra.mxu0 %v130
    %150 = vmatpush.bf16.msra.mxu0 %v129
    %151 = vmatpush.bf16.msra.mxu0 %v128
    %152 = vmatmul.bf16.gmra.mxu0 %v94
    %v153 = vpop.f32.mrf.mxu0
    %v154 = vadd.f32 %v88, %v153
    %v155 = vpop.f32.mrf.mxu0
    %v156 = vadd.f32 %v88, %v155
    %157 = vdwg.mxu0
    %v158 = vmul.f32 %v154, %v154
    %v159 = vmul.f32 %v156, %v156
    %v160 = vmul.f32 %v154, %v158
    %v161 = vmul.f32 %v156, %v159
    %v162 = vmul.f32 %v160, 0.044715
    %v163 = vmul.f32 %v161, 0.044715
    %v164 = vadd.f32 %v154, %v162
    %v165 = vadd.f32 %v156, %v163
    %v166 = vmul.f32 %v164, 0.7978846
    %v167 = vmul.f32 %v165, 0.7978846
    %v168 = vtanh.pop %v166
    %v169 = vtanh.pop %v167
    %v170 = vadd.f32 %v168, 1.0
    %v171 = vadd.f32 %v169, 1.0
    %v172 = vmul.f32 %v170, 0.5
    %v173 = vmul.f32 %v171, 0.5
    %v174 = vmul.f32 %v154, %v172
    %v175 = vmul.f32 %v156, %v173
    %v176 = vpack.c.bf16 %v175, %v174
    %v177 = vld [vmem:[#allocation7] sm:$0xf]
    %v178 = vld [vmem:[#allocation7 + $0x4] sm:$0xf]
    %v179 = vld [vmem:[#allocation7 + $0x8] sm:$0xf]
    %v180 = vld [vmem:[#allocation7 + $0xc] sm:$0xf]
    %v181 = vld [vmem:[#allocation7 + $0x10] sm:$0xf]
    %v182 = vld [vmem:[#allocation7 + $0x14] sm:$0xf]
    %v183 = vld [vmem:[#allocation7 + $0x18] sm:$0xf]
    %v184 = vld [vmem:[#allocation7 + $0x1c] sm:$0xf]
    %v185 = vld [vmem:[#allocation7 + $0x20] sm:$0xf]
    %v186 = vld [vmem:[#allocation7 + $0x24] sm:$0xf]
    %v187 = vld [vmem:[#allocation7 + $0x28] sm:$0xf]
    %v188 = vld [vmem:[#allocation7 + $0x2c] sm:$0xf]
    %v189 = vld [vmem:[#allocation7 + $0x30] sm:$0xf]
    %v190 = vld [vmem:[#allocation7 + $0x34] sm:$0xf]
    %v191 = vld [vmem:[#allocation7 + $0x38] sm:$0xf]
    %v192 = vld [vmem:[#allocation7 + $0x3c] sm:$0xf]
    %v193 = vld [vmem:[%s4] sm:$0x1]
    %v195 = vperm.slane %v193, 0
    %v213 = vunpack.c.l.b16 %v177
    %v214 = vunpack.c.l.b16 %v178
    %v215 = vunpack.c.l.b16 %v179
    %v216 = vunpack.c.l.b16 %v180
    %v217 = vunpack.c.l.b16 %v181
    %v218 = vunpack.c.l.b16 %v182
    %v219 = vunpack.c.l.b16 %v183
    %v220 = vunpack.c.l.b16 %v184
    %v221 = vunpack.c.l.b16 %v185
    %v222 = vunpack.c.l.b16 %v186
    %v223 = vunpack.c.l.b16 %v187
    %v224 = vunpack.c.l.b16 %v188
    %v225 = vunpack.c.l.b16 %v189
    %v226 = vunpack.c.l.b16 %v190
    %v227 = vunpack.c.l.b16 %v191
    %v228 = vunpack.c.l.b16 %v192
    %v229 = vpack.c.b16 %v214, %v213
    %v230 = vpack.c.b16 %v216, %v215
    %v231 = vpack.c.b16 %v218, %v217
    %v232 = vpack.c.b16 %v220, %v219
    %v233 = vpack.c.b16 %v222, %v221
    %v234 = vpack.c.b16 %v224, %v223
    %v235 = vpack.c.b16 %v226, %v225
    %v236 = vpack.c.b16 %v228, %v227
    %245 = vmatpush.bf16.msra.mxu0 %v236
    %246 = vmatpush.bf16.msra.mxu0 %v235
    %247 = vmatpush.bf16.msra.mxu0 %v234
    %248 = vmatpush.bf16.msra.mxu0 %v233
    %249 = vmatpush.bf16.msra.mxu0 %v232
    %250 = vmatpush.bf16.msra.mxu0 %v231
    %251 = vmatpush.bf16.msra.mxu0 %v230
    %252 = vmatpush.bf16.msra.mxu0 %v229
    %253 = vmatmul.bf16.gmra.mxu0 %v176
    %v254 = vpop.f32.mrf.mxu0
    %v255 = vadd.f32 %v195, %v254
    %v256 = vpop.f32.mrf.mxu0
    %v257 = vadd.f32 %v195, %v256
    %258 = vdwg.mxu0
    %259 = vst [vmem:[#allocation8] sm:$0xff] %v255
    %260 = vst [vmem:[#allocation8 + $0x8] sm:$0xff] %v257
    // Predicated region
    $region34: #{tpu_custom_call.1} parent=1 // pred_check
      _
    $region35: #{tpu_custom_call.1} parent=1 // pred_check_branch
      %262 = sbr.rel (0) target = $region37
    $region36: #{tpu_custom_call.1} parent=1 // pred_region
      %264 = vsyncadd [#allocation4], 0
      %s265 = sshll.u32 [#allocation8], 4
      %s266 = int_to_ptr.vmem [resolvable:$true] %s265
      %s267 = sshll.u32 %s5, 4
      %s268 = int_to_ptr.hbm [resolvable:$true] %s267
      %273 = dma.vmem_to_hbm [thread:$0]  %s266, 256, %s268, [#allocation4], 128, 128, 8
    $region37: #{tpu_custom_call.1} parent=1 // pred_fallthru
      _
    // Predicated region
    $region38: #{tpu_custom_call.1} parent=1 // pred_check
      _
    $region39: #{tpu_custom_call.1} parent=1 // pred_check_branch
      %275 = sbr.rel (0) target = $region41
    $region40: #{tpu_custom_call.1} parent=1 // pred_region
      %277 = dma.done [#allocation4], 256
    $region41: #{tpu_custom_call.1} parent=1 // pred_fallthru
      _
    %278 = vsyncpa [#allocation3], 1
    %279 = vsyncpa [#allocation6], 1
    %280 = vsyncpa [#allocation4], 1

// kernel: tpu_custom_call.1
$region0: #{tpu_custom_call.1}
  #allocation0 [shape = 'u32[]', space=smem, size = 0x4, offset = 0x4, fixed_abs, tag = 'smem constant byte address 0x4 - core index']
  #allocation1 [shape = 'u32[72,128]{1,0:T(1,128)}', space=vmem, size = 0x9000, scoped, tag = 'internal scratch']
  %s0 = inlined_call_operand.hbm [shape: bf16[16,128], index: 0, kind: input, shape index: {}]
  %s1 = inlined_call_operand.hbm [shape: bf16[128,128], index: 1, kind: input, shape index: {}]
  %s2 = inlined_call_operand.vmem [shape: f32[1,128], index: 2, kind: input, shape index: {}]
  %s3 = inlined_call_operand.hbm [shape: bf16[128,128], index: 3, kind: input, shape index: {}]
  %s4 = inlined_call_operand.vmem [shape: f32[1,128], index: 4, kind: input, shape index: {}]
  %s5 = inlined_call_operand.hbm [shape: f32[16,128], index: 5, kind: output, shape index: {}]
  %s6 = sld [smem:[#allocation0]]
  $region42: #{tpu_custom_call.1} parent=0
    _
  %s8 = ssub.s32 1, %s6
  %s9 = scalar_select 0, %s8, %s6
  $region1: #{tpu_custom_call.1} parent=0
    #allocation2 [shape = 'u8[4096]{0}', space=vmem, size = 0x1000, scoped, tag = 'input window, operand 0, single buffered']
    #allocation3 [shape = 's32[1]{0}', space=sflag, size = 0x4, scoped, tag = 'scoped memory for tpu_custom_call.1']
    #allocation4 [shape = 's32[1]{0}', space=sflag, size = 0x4, scoped, tag = 'scoped memory for tpu_custom_call.1']
    #allocation5 [shape = 'u8[32768]{0}', space=vmem, size = 0x8000, scoped, tag = 'input window, operand 1, single buffered']
    #allocation6 [shape = 's32[1]{0}', space=sflag, size = 0x4, scoped, tag = 'scoped memory for tpu_custom_call.1']
    #allocation7 [shape = 'u8[32768]{0}', space=vmem, size = 0x8000, scoped, tag = 'input window, operand 3, single buffered']
    #allocation8 [shape = 'u8[8192]{0}', space=vmem, size = 0x2000, scoped, tag = 'output window, operand 0, single buffered']
    %10 = vsyncpa [#allocation3], 0
    %11 = vsyncpa [#allocation6], 0
    %12 = vsyncpa [#allocation4], 0
    // Predicated region
    $region2: #{tpu_custom_call.1} parent=1 // pred_check
      _
    $region3: #{tpu_custom_call.1} parent=1 // pred_check_branch
      %14 = sbr.rel (0) target = $region5
    $region4: #{tpu_custom_call.1} parent=1 // pred_region
      %16 = vsyncadd [#allocation3], 0
      %s17 = sshll.u32 %s0, 4
      %s18 = int_to_ptr.hbm [resolvable:$true] %s17
      %s19 = sshll.u32 [#allocation2], 4
      %s20 = int_to_ptr.vmem [resolvable:$true] %s19
      %25 = dma.hbm_to_vmem [thread:$0]  %s18, 128, %s20, [#allocation3], 64, 64, 4
    $region5: #{tpu_custom_call.1} parent=1 // pred_fallthru
      _
    // Predicated region
    $region6: #{tpu_custom_call.1} parent=1 // pred_check
      _
    $region7: #{tpu_custom_call.1} parent=1 // pred_check_branch
      %27 = sbr.rel (0) target = $region9
    $region8: #{tpu_custom_call.1} parent=1 // pred_region
      %29 = vsyncadd [#allocation6], 0
      %s30 = sshll.u32 %s1, 4
      %s31 = int_to_ptr.hbm [resolvable:$true] %s30
      %s32 = sshll.u32 [#allocation5], 4
      %s33 = int_to_ptr.vmem [resolvable:$true] %s32
      %38 = dma.hbm_to_vmem [thread:$0]  %s31, 1024, %s33, [#allocation6], 64, 64, 4
    $region9: #{tpu_custom_call.1} parent=1 // pred_fallthru
      _
    // Predicated region
    $region10: #{tpu_custom_call.1} parent=1 // pred_check
      _
    $region11: #{tpu_custom_call.1} parent=1 // pred_check_branch
      %40 = sbr.rel (0) target = $region13
    $region12: #{tpu_custom_call.1} parent=1 // pred_region
      _
    $region13: #{tpu_custom_call.1} parent=1 // pred_fallthru
      _
    // Predicated region
    $region14: #{tpu_custom_call.1} parent=1 // pred_check
      _
    $region15: #{tpu_custom_call.1} parent=1 // pred_check_branch
      %42 = sbr.rel (0) target = $region17
    $region16: #{tpu_custom_call.1} parent=1 // pred_region
      %44 = vsyncadd [#allocation6], 0
      %s45 = sshll.u32 %s3, 4
      %s46 = int_to_ptr.hbm [resolvable:$true] %s45
      %s47 = sshll.u32 [#allocation7], 4
      %s48 = int_to_ptr.vmem [resolvable:$true] %s47
      %53 = dma.hbm_to_vmem [thread:$0]  %s46, 1024, %s48, [#allocation6], 64, 64, 4
    $region17: #{tpu_custom_call.1} parent=1 // pred_fallthru
      _
    // Predicated region
    $region18: #{tpu_custom_call.1} parent=1 // pred_check
      _
    $region19: #{tpu_custom_call.1} parent=1 // pred_check_branch
      %55 = sbr.rel (0) target = $region21
    $region20: #{tpu_custom_call.1} parent=1 // pred_region
      _
    $region21: #{tpu_custom_call.1} parent=1 // pred_fallthru
      _
    // Predicated region
    $region22: #{tpu_custom_call.1} parent=1 // pred_check
      _
    $region23: #{tpu_custom_call.1} parent=1 // pred_check_branch
      %57 = sbr.rel (0) target = $region25
    $region24: #{tpu_custom_call.1} parent=1 // pred_region
      %59 = dma.done [#allocation3], 128
    $region25: #{tpu_custom_call.1} parent=1 // pred_fallthru
      _
    // Predicated region
    $region26: #{tpu_custom_call.1} parent=1 // pred_check
      _
    $region27: #{tpu_custom_call.1} parent=1 // pred_check_branch
      %61 = sbr.rel (0) target = $region29
    $region28: #{tpu_custom_call.1} parent=1 // pred_region
      %63 = dma.done [#allocation6], 1024
    $region29: #{tpu_custom_call.1} parent=1 // pred_fallthru
      _
    // Predicated region
    $region30: #{tpu_custom_call.1} parent=1 // pred_check
      _
    $region31: #{tpu_custom_call.1} parent=1 // pred_check_branch
      %65 = sbr.rel (0) target = $region33
    $region32: #{tpu_custom_call.1} parent=1 // pred_region
      %67 = dma.done [#allocation6], 1024
    $region33: #{tpu_custom_call.1} parent=1 // pred_fallthru
      _
    %v68 = vld [vmem:[#allocation2] sm:$0xf]
    %v69 = vld [vmem:[#allocation2 + $0x4] sm:$0xf]
    %v70 = vld [vmem:[#allocation5] sm:$0xf]
    %v71 = vld [vmem:[#allocation5 + $0x4] sm:$0xf]
    %v72 = vld [vmem:[#allocation5 + $0x8] sm:$0xf]
    %v73 = vld [vmem:[#allocation5 + $0xc] sm:$0xf]
    %v74 = vld [vmem:[#allocation5 + $0x10] sm:$0xf]
    %v75 = vld [vmem:[#allocation5 + $0x14] sm:$0xf]
    %v76 = vld [vmem:[#allocation5 + $0x18] sm:$0xf]
    %v77 = vld [vmem:[#allocation5 + $0x1c] sm:$0xf]
    %v78 = vld [vmem:[#allocation5 + $0x20] sm:$0xf]
    %v79 = vld [vmem:[#allocation5 + $0x24] sm:$0xf]
    %v80 = vld [vmem:[#allocation5 + $0x28] sm:$0xf]
    %v81 = vld [vmem:[#allocation5 + $0x2c] sm:$0xf]
    %v82 = vld [vmem:[#allocation5 + $0x30] sm:$0xf]
    %v83 = vld [vmem:[#allocation5 + $0x34] sm:$0xf]
    %v84 = vld [vmem:[#allocation5 + $0x38] sm:$0xf]
    %v85 = vld [vmem:[#allocation5 + $0x3c] sm:$0xf]
    %v86 = vld [vmem:[%s2] sm:$0x1]
    %v88 = vperm.slane %v86, 0
    %v92 = vunpack.c.l.b16 %v68
    %v93 = vunpack.c.l.b16 %v69
    %v94 = vpack.c.b16 %v93, %v92
    %v112 = vunpack.c.l.b16 %v70
    %v113 = vunpack.c.l.b16 %v71
    %v114 = vunpack.c.l.b16 %v72
    %v115 = vunpack.c.l.b16 %v73
    %v116 = vunpack.c.l.b16 %v74
    %v117 = vunpack.c.l.b16 %v75
    %v118 = vunpack.c.l.b16 %v76
    %v119 = vunpack.c.l.b16 %v77
    %v120 = vunpack.c.l.b16 %v78
    %v121 = vunpack.c.l.b16 %v79
    %v122 = vunpack.c.l.b16 %v80
    %v123 = vunpack.c.l.b16 %v81
    %v124 = vunpack.c.l.b16 %v82
    %v125 = vunpack.c.l.b16 %v83
    %v126 = vunpack.c.l.b16 %v84
    %v127 = vunpack.c.l.b16 %v85
    %v128 = vpack.c.b16 %v113, %v112
    %v129 = vpack.c.b16 %v115, %v114
    %v130 = vpack.c.b16 %v117, %v116
    %v131 = vpack.c.b16 %v119, %v118
    %v132 = vpack.c.b16 %v121, %v120
    %v133 = vpack.c.b16 %v123, %v122
    %v134 = vpack.c.b16 %v125, %v124
    %v135 = vpack.c.b16 %v127, %v126
    %144 = vmatpush.bf16.msra.mxu0 %v135
    %145 = vmatpush.bf16.msra.mxu0 %v134
    %146 = vmatpush.bf16.msra.mxu0 %v133
    %147 = vmatpush.bf16.msra.mxu0 %v132
    %148 = vmatpush.bf16.msra.mxu0 %v131
    %149 = vmatpush.bf16.msra.mxu0 %v130
    %150 = vmatpush.bf16.msra.mxu0 %v129
    %151 = vmatpush.bf16.msra.mxu0 %v128
    %152 = vmatmul.bf16.gmra.mxu0 %v94
    %v153 = vpop.f32.mrf.mxu0
    %v154 = vadd.f32 %v88, %v153
    %v155 = vpop.f32.mrf.mxu0
    %v156 = vadd.f32 %v88, %v155
    %157 = vdwg.mxu0
    %v158 = vmul.f32 %v154, %v154
    %v159 = vmul.f32 %v156, %v156
    %v160 = vmul.f32 %v154, %v158
    %v161 = vmul.f32 %v156, %v159
    %v162 = vmul.f32 %v160, 0.044715
    %v163 = vmul.f32 %v161, 0.044715
    %v164 = vadd.f32 %v154, %v162
    %v165 = vadd.f32 %v156, %v163
    %v166 = vmul.f32 %v164, 0.7978846
    %v167 = vmul.f32 %v165, 0.7978846
    %v168 = vtanh.pop %v166
    %v169 = vtanh.pop %v167
    %v170 = vadd.f32 %v168, 1.0
    %v171 = vadd.f32 %v169, 1.0
    %v172 = vmul.f32 %v170, 0.5
    %v173 = vmul.f32 %v171, 0.5
    %v174 = vmul.f32 %v154, %v172
    %v175 = vmul.f32 %v156, %v173
    %v176 = vpack.c.bf16 %v175, %v174
    %v177 = vld [vmem:[#allocation7] sm:$0xf]
    %v178 = vld [vmem:[#allocation7 + $0x4] sm:$0xf]
    %v179 = vld [vmem:[#allocation7 + $0x8] sm:$0xf]
    %v180 = vld [vmem:[#allocation7 + $0xc] sm:$0xf]
    %v181 = vld [vmem:[#allocation7 + $0x10] sm:$0xf]
    %v182 = vld [vmem:[#allocation7 + $0x14] sm:$0xf]
    %v183 = vld [vmem:[#allocation7 + $0x18] sm:$0xf]
    %v184 = vld [vmem:[#allocation7 + $0x1c] sm:$0xf]
    %v185 = vld [vmem:[#allocation7 + $0x20] sm:$0xf]
    %v186 = vld [vmem:[#allocation7 + $0x24] sm:$0xf]
    %v187 = vld [vmem:[#allocation7 + $0x28] sm:$0xf]
    %v188 = vld [vmem:[#allocation7 + $0x2c] sm:$0xf]
    %v189 = vld [vmem:[#allocation7 + $0x30] sm:$0xf]
    %v190 = vld [vmem:[#allocation7 + $0x34] sm:$0xf]
    %v191 = vld [vmem:[#allocation7 + $0x38] sm:$0xf]
    %v192 = vld [vmem:[#allocation7 + $0x3c] sm:$0xf]
    %v193 = vld [vmem:[%s4] sm:$0x1]
    %v195 = vperm.slane %v193, 0
    %v213 = vunpack.c.l.b16 %v177
    %v214 = vunpack.c.l.b16 %v178
    %v215 = vunpack.c.l.b16 %v179
    %v216 = vunpack.c.l.b16 %v180
    %v217 = vunpack.c.l.b16 %v181
    %v218 = vunpack.c.l.b16 %v182
    %v219 = vunpack.c.l.b16 %v183
    %v220 = vunpack.c.l.b16 %v184
    %v221 = vunpack.c.l.b16 %v185
    %v222 = vunpack.c.l.b16 %v186
    %v223 = vunpack.c.l.b16 %v187
    %v224 = vunpack.c.l.b16 %v188
    %v225 = vunpack.c.l.b16 %v189
    %v226 = vunpack.c.l.b16 %v190
    %v227 = vunpack.c.l.b16 %v191
    %v228 = vunpack.c.l.b16 %v192
    %v229 = vpack.c.b16 %v214, %v213
    %v230 = vpack.c.b16 %v216, %v215
    %v231 = vpack.c.b16 %v218, %v217
    %v232 = vpack.c.b16 %v220, %v219
    %v233 = vpack.c.b16 %v222, %v221
    %v234 = vpack.c.b16 %v224, %v223
    %v235 = vpack.c.b16 %v226, %v225
    %v236 = vpack.c.b16 %v228, %v227
    %245 = vmatpush.bf16.msra.mxu0 %v236
    %246 = vmatpush.bf16.msra.mxu0 %v235
    %247 = vmatpush.bf16.msra.mxu0 %v234
    %248 = vmatpush.bf16.msra.mxu0 %v233
    %249 = vmatpush.bf16.msra.mxu0 %v232
    %250 = vmatpush.bf16.msra.mxu0 %v231
    %251 = vmatpush.bf16.msra.mxu0 %v230
    %252 = vmatpush.bf16.msra.mxu0 %v229
    %253 = vmatmul.bf16.gmra.mxu0 %v176
    %v254 = vpop.f32.mrf.mxu0
    %v255 = vadd.f32 %v195, %v254
    %v256 = vpop.f32.mrf.mxu0
    %v257 = vadd.f32 %v195, %v256
    %258 = vdwg.mxu0
    %259 = vst [vmem:[#allocation8] sm:$0xff] %v255
    %260 = vst [vmem:[#allocation8 + $0x8] sm:$0xff] %v257
    // Predicated region
    $region34: #{tpu_custom_call.1} parent=1 // pred_check
      _
    $region35: #{tpu_custom_call.1} parent=1 // pred_check_branch
      %262 = sbr.rel (0) target = $region37
    $region36: #{tpu_custom_call.1} parent=1 // pred_region
      %264 = vsyncadd [#allocation4], 0
      %s265 = sshll.u32 [#allocation8], 4
      %s266 = int_to_ptr.vmem [resolvable:$true] %s265
      %s267 = sshll.u32 %s5, 4
      %s268 = int_to_ptr.hbm [resolvable:$true] %s267
      %273 = dma.vmem_to_hbm [thread:$0]  %s266, 256, %s268, [#allocation4], 128, 128, 8
    $region37: #{tpu_custom_call.1} parent=1 // pred_fallthru
      _
    // Predicated region
    $region38: #{tpu_custom_call.1} parent=1 // pred_check
      _
    $region39: #{tpu_custom_call.1} parent=1 // pred_check_branch
      %275 = sbr.rel (0) target = $region41
    $region40: #{tpu_custom_call.1} parent=1 // pred_region
      %277 = dma.done [#allocation4], 256
    $region41: #{tpu_custom_call.1} parent=1 // pred_fallthru
      _
    %278 = vsyncpa [#allocation3], 1
    %279 = vsyncpa [#allocation6], 1
    %280 = vsyncpa [#allocation4], 1

</llo_original>
